<compile_context>
chip_gen: v6e
topology: v6e:2x2x1
jax: 0.10.0
libtpu: 0.0.40
codegen_flags: <defaults>
</compile_context>

<pallas_src>
import jax
import jax.numpy as jnp
from jax.experimental import pallas as pl
from jax.experimental.pallas import tpu as pltpu


def _residual_linear_kernel(x_ref, w_ref, b_ref, o_ref):
    # o = x + (x @ W + b)   -- fused matmul + bias + residual, f32 accumulate.
    x = x_ref[...]
    y = jnp.dot(x, w_ref[...], preferred_element_type=jnp.float32)
    o_ref[...] = (
        x.astype(jnp.float32) + y + b_ref[...].astype(jnp.float32)
    ).astype(o_ref.dtype)


def _round_up(x, m):
    return ((x + m - 1) // m) * m


def custom_residual_linear(x, w, b, *, target_tile_rows=1024):
    """x: (B, S, D), w: (D, D), b: (D,).  Returns x + (x @ w + b)."""
    B, S, D = x.shape
    M = B * S
    x2 = x.reshape(M, D)

    # ---- Lane-dense folding -------------------------------------------------
    # Row-major (M, D) is byte-identical to (M/fold, fold*D).  Choosing fold so
    # that fold*D == 128 makes every load/store full-lane-width.  The matmul
    # stays exact with a block-diagonal weight and a tiled bias.
    if D < 128 and 128 % D == 0:
        fold = 128 // D
    else:
        fold = 1
    D2 = D * fold

    if fold > 1:
        w2 = jnp.kron(jnp.eye(fold, dtype=w.dtype), w)       # (D2, D2) block-diag
        b2 = jnp.tile(b, fold).reshape(1, D2)                 # (1, D2)
    else:
        w2 = w
        b2 = b.reshape(1, D2)

    # ---- Tile selection -----------------------------------------------------
    M2 = pl.cdiv(M, fold)                                     # folded row count
    tile_rows = min(_round_up(target_tile_rows, 8), _round_up(M2, 8))
    # VMEM budget: double-buffered in + out tiles (f32) + resident weight,
    # kept comfortably under the v7x 32 MiB scoped default.
    while tile_rows > 8 and (4 * tile_rows * D2 * 4 + D2 * D2 * 4) > (24 << 20):
        tile_rows //= 2
    tile_rows = max(8, _round_up(tile_rows, 8))

    # ---- Pad rows up to the tile (no divisibility assert) -------------------
    M2_pad = _round_up(M2, tile_rows)
    M_pad = M2_pad * fold
    if M_pad != M:
        x2 = jnp.pad(x2, ((0, M_pad - M), (0, 0)))
    x2 = x2.reshape(M2_pad, D2)

    grid = (M2_pad // tile_rows,)
    itemsize = jnp.dtype(x.dtype).itemsize
    cost = pl.CostEstimate(
        flops=2 * M2_pad * D2 * D2,
        transcendentals=0,
        bytes_accessed=(2 * M2_pad * D2 + D2 * D2 + D2) * itemsize,
    )

    out = pl.pallas_call(
        _residual_linear_kernel,
        out_shape=jax.ShapeDtypeStruct((M2_pad, D2), x.dtype),
        grid_spec=pltpu.PrefetchScalarGridSpec(
            num_scalar_prefetch=0,
            grid=grid,
            in_specs=[
                pl.BlockSpec((tile_rows, D2), lambda i: (i, 0)),  # x tile
                pl.BlockSpec((D2, D2), lambda i: (0, 0)),         # resident W
                pl.BlockSpec((1, D2), lambda i: (0, 0)),          # resident bias
            ],
            out_specs=pl.BlockSpec((tile_rows, D2), lambda i: (i, 0)),
        ),
        compiler_params=pltpu.CompilerParams(
            dimension_semantics=("parallel",),
        ),
        cost_estimate=cost,
    )(x2, w2, b2)

    # Unfold, drop row padding, restore (B, S, D).
    out = out.reshape(M_pad, D)[:M]
    return out.reshape(B, S, D)


def reference(x, w, b):
    return x + (jnp.einsum("bsd,de->bse", x, w) + b)


if __name__ == "__main__":
    key = jax.random.PRNGKey(0)
    kx, kw, kb = jax.random.split(key, 3)

    B, S, D = 2, 8, 32
    x = jax.random.normal(kx, (B, S, D), dtype=jnp.float32)
    # Deterministic parameter init (matches nn.Linear shapes: W (D, D), b (D,))
    w = jax.random.normal(kw, (D, D), dtype=jnp.float32) * 0.05
    b = jax.random.normal(kb, (D,), dtype=jnp.float32) * 0.05

    out = custom_residual_linear(x, w, b)
    out = jax.block_until_ready(out)

    ref = reference(x, w, b)
    assert out.shape == (B, S, D)
    assert jnp.allclose(out, ref, atol=1e-5, rtol=1e-5), "mismatch vs reference"

    print("KERNEL_OK")
</pallas_src>

<mosaic_0001>
module attributes {stable_mosaic.version = 11 : i64} {
  func.func @_residual_linear_kernel(%arg0: i32, %arg1: memref<8x128xf32, #tpu.memory_space<vmem>>, %arg2: memref<128x128xf32, #tpu.memory_space<vmem>>, %arg3: memref<1x128xf32, #tpu.memory_space<vmem>>, %arg4: memref<8x128xf32, #tpu.memory_space<vmem>>) attributes {dimension_semantics = [#tpu.dimension_semantics<parallel>], iteration_bounds = array<i64: 1>, scalar_prefetch = 0 : i64, scratch_operands = 0 : i64, tpu.core_type = #tpu.core_type<tc>, window_params = [{transform_indices = @transform_0, window_bounds = array<i64: 8, 128>}, {pipeline_mode = #tpu.pipeline_mode<synchronous>, transform_indices = @transform_1, window_bounds = array<i64: 128, 128>}, {pipeline_mode = #tpu.pipeline_mode<synchronous>, transform_indices = @transform_2, window_bounds = array<i64: 1, 128>}, {transform_indices = @transform_3, window_bounds = array<i64: 8, 128>}]} {
    %c0 = arith.constant 0 : index
    %c0_0 = arith.constant 0 : index
    %0 = vector.load %arg1[%c0, %c0_0] : memref<8x128xf32, #tpu.memory_space<vmem>>, vector<8x128xf32>
    %c0_1 = arith.constant 0 : index
    %c0_2 = arith.constant 0 : index
    %1 = vector.load %arg2[%c0_1, %c0_2] : memref<128x128xf32, #tpu.memory_space<vmem>>, vector<128x128xf32>
    %cst = arith.constant dense<0.000000e+00> : vector<8x128xf32>
    %2 = tpu.matmul %0, %1, %cst {dimension_numbers = #tpu.dot_dimension_numbers<[1], [0], [0], [1], [0, 0, 1, 1], [], []>} : vector<8x128xf32>, vector<128x128xf32>, vector<8x128xf32> -> vector<8x128xf32>
    %3 = arith.addf %0, %2 : vector<8x128xf32>
    %c0_3 = arith.constant 0 : index
    %c0_4 = arith.constant 0 : index
    %4 = vector.load %arg3[%c0_3, %c0_4] : memref<1x128xf32, #tpu.memory_space<vmem>>, vector<1x128xf32>
    %5 = vector.broadcast %4 : vector<1x128xf32> to vector<8x128xf32>
    %6 = arith.addf %3, %5 : vector<8x128xf32>
    %c0_5 = arith.constant 0 : index
    %c0_6 = arith.constant 0 : index
    %7 = vector.load %arg4[%c0_5, %c0_6] : memref<8x128xf32, #tpu.memory_space<vmem>>, vector<8x128xf32>
    tpu.vector_store %arg4[%c0_5, %c0_6], %6 {strides = array<i32>} : memref<8x128xf32, #tpu.memory_space<vmem>>, vector<8x128xf32>,
    return
  }
  func.func @transform_0(%arg0: i32) -> (i32, i32) {
    %c0_i32 = arith.constant 0 : i32
    %c0_i32_0 = arith.constant 0 : i32
    return %arg0, %c0_i32 : i32, i32
  }
  func.func @transform_1(%arg0: i32) -> (i32, i32) {
    %c0_i32 = arith.constant 0 : i32
    %c0_i32_0 = arith.constant 0 : i32
    %c0_i32_1 = arith.constant 0 : i32
    return %c0_i32, %c0_i32_0 : i32, i32
  }
  func.func @transform_2(%arg0: i32) -> (i32, i32) {
    %c0_i32 = arith.constant 0 : i32
    %c0_i32_0 = arith.constant 0 : i32
    %c0_i32_1 = arith.constant 0 : i32
    return %c0_i32, %c0_i32_0 : i32, i32
  }
  func.func @transform_3(%arg0: i32) -> (i32, i32) {
    %c0_i32 = arith.constant 0 : i32
    %c0_i32_0 = arith.constant 0 : i32
    return %arg0, %c0_i32 : i32, i32
  }
}

</mosaic_0001>

<llo_original>
// kernel: tpu_custom_call.1
$region0: #{tpu_custom_call.1}
  #allocation0 [shape = 'u32[]', space=smem, size = 0x4, offset = 0x4, fixed_abs, tag = 'smem constant byte address 0x4 - core index']
  #allocation1 [shape = 'u32[144,128]{1,0:T(1,128)}', space=vmem, size = 0x12000, scoped, tag = 'internal scratch']
  %s0 = inlined_call_operand.hbm [shape: f32[8,128], index: 0, kind: input, shape index: {}]
  %s1 = inlined_call_operand.hbm [shape: f32[128,128], index: 1, kind: input, shape index: {}]
  %s2 = inlined_call_operand.vmem [shape: f32[1,128], index: 2, kind: input, shape index: {}]
  %s3 = inlined_call_operand.hbm [shape: f32[8,128], index: 3, kind: output, shape index: {}]
  %s4 = sld [smem:[#allocation0]]
  $region30: #{tpu_custom_call.1} parent=0
    _
  %s6 = ssub.s32 1, %s4
  %s7 = scalar_select 0, %s6, %s4
  $region1: #{tpu_custom_call.1} parent=0
    #allocation2 [shape = 'u8[4096]{0}', space=vmem, size = 0x1000, scoped, tag = 'input window, operand 0, single buffered']
    #allocation3 [shape = 's32[1]{0}', space=sflag, size = 0x4, scoped, tag = 'scoped memory for tpu_custom_call.1']
    #allocation4 [shape = 's32[1]{0}', space=sflag, size = 0x4, scoped, tag = 'scoped memory for tpu_custom_call.1']
    #allocation5 [shape = 'u8[65536]{0}', space=vmem, size = 0x10000, scoped, tag = 'input window, operand 1, single buffered']
    #allocation6 [shape = 's32[1]{0}', space=sflag, size = 0x4, scoped, tag = 'scoped memory for tpu_custom_call.1']
    #allocation7 [shape = 'u8[4096]{0}', space=vmem, size = 0x1000, scoped, tag = 'output window, operand 0, single buffered']
    %8 = vsyncpa [#allocation3], 0
    %9 = vsyncpa [#allocation6], 0
    %10 = vsyncpa [#allocation4], 0
    // Predicated region
    $region2: #{tpu_custom_call.1} parent=1 // pred_check
      _
    $region3: #{tpu_custom_call.1} parent=1 // pred_check_branch
      %12 = sbr.rel (0) target = $region5
    $region4: #{tpu_custom_call.1} parent=1 // pred_region
      %s14 = ssub.s32 128, 128
      %15 = vsyncadd [#allocation3], %s14
      %s17 = sshll.u32 [#allocation2], 4
      %s18 = int_to_ptr.vmem [resolvable:$true] %s17
      %20 = dma.hbm_to_vmem [thread:$0]  %s0, 128, %s18, [#allocation3]
    $region5: #{tpu_custom_call.1} parent=1 // pred_fallthru
      _
    // Predicated region
    $region6: #{tpu_custom_call.1} parent=1 // pred_check
      _
    $region7: #{tpu_custom_call.1} parent=1 // pred_check_branch
      %22 = sbr.rel (0) target = $region9
    $region8: #{tpu_custom_call.1} parent=1 // pred_region
      %s24 = ssub.s32 2048, 2048
      %25 = vsyncadd [#allocation6], %s24
      %s26 = sshll.u32 [#allocation5], 4
      %s27 = int_to_ptr.vmem [resolvable:$true] %s26
      %32 = dma.hbm_to_vmem [thread:$0]  %s1, 2048, %s27, [#allocation6], 128, 128, 8
    $region9: #{tpu_custom_call.1} parent=1 // pred_fallthru
      _
    // Predicated region
    $region10: #{tpu_custom_call.1} parent=1 // pred_check
      _
    $region11: #{tpu_custom_call.1} parent=1 // pred_check_branch
      %34 = sbr.rel (0) target = $region13
    $region12: #{tpu_custom_call.1} parent=1 // pred_region
      _
    $region13: #{tpu_custom_call.1} parent=1 // pred_fallthru
      _
    // Predicated region
    $region14: #{tpu_custom_call.1} parent=1 // pred_check
      _
    $region15: #{tpu_custom_call.1} parent=1 // pred_check_branch
      %36 = sbr.rel (0) target = $region17
    $region16: #{tpu_custom_call.1} parent=1 // pred_region
      %37 = dma.done [#allocation3], 128
    $region17: #{tpu_custom_call.1} parent=1 // pred_fallthru
      _
    // Predicated region
    $region18: #{tpu_custom_call.1} parent=1 // pred_check
      _
    $region19: #{tpu_custom_call.1} parent=1 // pred_check_branch
      %39 = sbr.rel (0) target = $region21
    $region20: #{tpu_custom_call.1} parent=1 // pred_region
      %40 = dma.done [#allocation6], 2048
    $region21: #{tpu_custom_call.1} parent=1 // pred_fallthru
      _
    %v41 = vld [vmem:[#allocation2] sm:$0xff]
    %v42 = vld [vmem:[#allocation5] sm:$0xff]
    %v43 = vld [vmem:[#allocation5 + $0x8] sm:$0xff]
    %v44 = vld [vmem:[#allocation5 + $0x10] sm:$0xff]
    %v45 = vld [vmem:[#allocation5 + $0x18] sm:$0xff]
    %v46 = vld [vmem:[#allocation5 + $0x20] sm:$0xff]
    %v47 = vld [vmem:[#allocation5 + $0x28] sm:$0xff]
    %v48 = vld [vmem:[#allocation5 + $0x30] sm:$0xff]
    %v49 = vld [vmem:[#allocation5 + $0x38] sm:$0xff]
    %v50 = vld [vmem:[#allocation5 + $0x40] sm:$0xff]
    %v51 = vld [vmem:[#allocation5 + $0x48] sm:$0xff]
    %v52 = vld [vmem:[#allocation5 + $0x50] sm:$0xff]
    %v53 = vld [vmem:[#allocation5 + $0x58] sm:$0xff]
    %v54 = vld [vmem:[#allocation5 + $0x60] sm:$0xff]
    %v55 = vld [vmem:[#allocation5 + $0x68] sm:$0xff]
    %v56 = vld [vmem:[#allocation5 + $0x70] sm:$0xff]
    %v57 = vld [vmem:[#allocation5 + $0x78] sm:$0xff]
    %58 = vmatprep.subr.mxu0 0.0
    %59 = vmatpush1.msra.mxu0 %v57
    %60 = vmatprep.subr.mxu0 0.0
    %61 = vmatpush1.msra.mxu0 %v56
    %62 = vmatprep.subr.mxu0 0.0
    %63 = vmatpush1.msra.mxu0 %v55
    %64 = vmatprep.subr.mxu0 0.0
    %65 = vmatpush1.msra.mxu0 %v54
    %66 = vmatprep.subr.mxu0 0.0
    %67 = vmatpush1.msra.mxu0 %v53
    %68 = vmatprep.subr.mxu0 0.0
    %69 = vmatpush1.msra.mxu0 %v52
    %70 = vmatprep.subr.mxu0 0.0
    %71 = vmatpush1.msra.mxu0 %v51
    %72 = vmatprep.subr.mxu0 0.0
    %73 = vmatpush1.msra.mxu0 %v50
    %74 = vmatprep.subr.mxu0 0.0
    %75 = vmatpush1.msra.mxu0 %v49
    %76 = vmatprep.subr.mxu0 0.0
    %77 = vmatpush1.msra.mxu0 %v48
    %78 = vmatprep.subr.mxu0 0.0
    %79 = vmatpush1.msra.mxu0 %v47
    %80 = vmatprep.subr.mxu0 0.0
    %81 = vmatpush1.msra.mxu0 %v46
    %82 = vmatprep.subr.mxu0 0.0
    %83 = vmatpush1.msra.mxu0 %v45
    %84 = vmatprep.subr.mxu0 0.0
    %85 = vmatpush1.msra.mxu0 %v44
    %86 = vmatprep.subr.mxu0 0.0
    %87 = vmatpush1.msra.mxu0 %v43
    %88 = vmatprep.subr.mxu0 0.0
    %89 = vmatpush1.msra.mxu0 %v42
    %90 = vmatprep.subr.mxu0 0.0
    %91 = vmatpush2.msra.mxu0 0.0
    %92 = vmatprep.subr.mxu0 0.0
    %93 = vmatpush2.msra.mxu0 0.0
    %94 = vmatprep.subr.mxu0 0.0
    %95 = vmatpush2.msra.mxu0 0.0
    %96 = vmatprep.subr.mxu0 0.0
    %97 = vmatpush2.msra.mxu0 0.0
    %98 = vmatprep.subr.mxu0 0.0
    %99 = vmatpush2.msra.mxu0 0.0
    %100 = vmatprep.subr.mxu0 0.0
    %101 = vmatpush2.msra.mxu0 0.0
    %102 = vmatprep.subr.mxu0 0.0
    %103 = vmatpush2.msra.mxu0 0.0
    %104 = vmatprep.subr.mxu0 0.0
    %105 = vmatpush2.msra.mxu0 0.0
    %106 = vmatprep.subr.mxu0 0.0
    %107 = vmatpush2.msra.mxu0 0.0
    %108 = vmatprep.subr.mxu0 0.0
    %109 = vmatpush2.msra.mxu0 0.0
    %110 = vmatprep.subr.mxu0 0.0
    %111 = vmatpush2.msra.mxu0 0.0
    %112 = vmatprep.subr.mxu0 0.0
    %113 = vmatpush2.msra.mxu0 0.0
    %114 = vmatprep.subr.mxu0 0.0
    %115 = vmatpush2.msra.mxu0 0.0
    %116 = vmatprep.subr.mxu0 0.0
    %117 = vmatpush2.msra.mxu0 0.0
    %118 = vmatprep.subr.mxu0 0.0
    %119 = vmatpush2.msra.mxu0 0.0
    %120 = vmatprep.subr.mxu0 0.0
    %121 = vmatpush2.msra.mxu0 0.0
    %122 = vmatprep.mubr.f32.mxu0 0.0
    %123 = vmatmul.mubr.f32.gmra.mxu0 %v41
    %v124 = vpop.f32.mrf.mxu0
    %v125 = vadd.f32 0.0, %v124
    %v126 = vpop.f32.mrf.mxu0
    %127 = vdwg.mxu0
    %v128 = vadd.f32 %v41, %v125
    %v129 = vld [vmem:[%s2] sm:$0x1]
    %v131 = vlaneseq
    %v132 = vshrl.u32 %v131, 7
    %v133 = vsub.s32 0, %v132
    %v134 = vrot.slane %v129, %v133
    %v136 = vadd.f32 %v128, %v134
    %137 = vst [vmem:[#allocation7] sm:$0xff] %v136
    // Predicated region
    $region22: #{tpu_custom_call.1} parent=1 // pred_check
      _
    $region23: #{tpu_custom_call.1} parent=1 // pred_check_branch
      %139 = sbr.rel (0) target = $region25
    $region24: #{tpu_custom_call.1} parent=1 // pred_region
      %s141 = ssub.s32 128, 128
      %142 = vsyncadd [#allocation4], %s141
      %s144 = sshll.u32 [#allocation7], 4
      %s145 = int_to_ptr.vmem [resolvable:$true] %s144
      %147 = dma.vmem_to_hbm [thread:$0]  %s145, 128, %s3, [#allocation4]
    $region25: #{tpu_custom_call.1} parent=1 // pred_fallthru
      _
    // Predicated region
    $region26: #{tpu_custom_call.1} parent=1 // pred_check
      _
    $region27: #{tpu_custom_call.1} parent=1 // pred_check_branch
      %149 = sbr.rel (0) target = $region29
    $region28: #{tpu_custom_call.1} parent=1 // pred_region
      %150 = dma.done [#allocation4], 128
    $region29: #{tpu_custom_call.1} parent=1 // pred_fallthru
      _
    %151 = vsyncpa [#allocation3], 1
    %152 = vsyncpa [#allocation6], 1
    %153 = vsyncpa [#allocation4], 1

</llo_original>
